<compile_context>
chip_gen: v6e
topology: v6e:2x2x1
jax: 0.10.0
libtpu: 0.0.40
codegen_flags: <defaults>
</compile_context>

<pallas_src>
import math

import jax
import jax.numpy as jnp
from jax.experimental import pallas as pl
from jax.experimental.pallas import tpu as pltpu

# LunarLander-v2: observation_size = 8, action_size = 4
OBS = 8
ACT = 4
H1 = 64   # n_neurons_first_layer
H2 = 32   # n_neurons_second_layer

_LANE = 128                   # batch tile must be a multiple of the lane width
_SMALL_BATCH_THRESHOLD = 512  # below this, plain XLA beats kernel-launch latency


def _round_up(n, m):
    return ((n + m - 1) // m) * m


def _device_kind():
    try:
        return jax.devices()[0].device_kind.lower()
    except Exception:
        return ""


def _default_batch_tile():
    """Per-generation batch tile: big enough to amortize ~0.35 us/grid-step overhead."""
    kind = _device_kind()
    if "v7" in kind:
        return 32768   # ~3.2 TB/s HBM per TC -> amortize fixed per-step cost hardest here
    if "v6" in kind:
        return 32768
    if "v5" in kind:
        return 16384   # v5e hits its HBM roofline earlier; diminishing returns beyond
    return 16384


def _vmem_limit_bytes(block_batch):
    """~2x(h1+h2 intermediates) + double-buffered x/out tiles + weights + headroom."""
    f32 = 4
    inter = (H1 + H2) * block_batch * f32           # h1/h2 (may spill to VMEM)
    io = (OBS + 8) * block_batch * f32              # x tile + sublane-padded (4->8) out tile
    weights = (H1 * OBS + H2 * H1 + ACT * H2 + H1 + H2 + ACT) * f32
    return int(2 * inter + 2 * 2 * io + 2 * weights + (4 << 20))


def mlp_kernel(x_ref, w1_ref, b1_ref, w2_ref, b2_ref, w3_ref, b3_ref, o_ref):
    """Entire MLP forward on one batch tile, transposed layout (features x batch)."""
    xT = x_ref[...]                                                      # (OBS, Bt)
    h1 = jnp.dot(w1_ref[...], xT, preferred_element_type=jnp.float32)    # (H1, Bt)
    h1 = jnp.maximum(h1 + b1_ref[...], 0.0)                              # ReLU
    h2 = jnp.dot(w2_ref[...], h1, preferred_element_type=jnp.float32)    # (H2, Bt)
    h2 = jnp.maximum(h2 + b2_ref[...], 0.0)                              # ReLU
    out = jnp.dot(w3_ref[...], h2, preferred_element_type=jnp.float32)   # (ACT, Bt)
    o_ref[...] = (out + b3_ref[...]).astype(o_ref.dtype)


def lunar_lander_mlp_forward_T(xT, params, block_batch=None):
    """Feature-major forward: xT is (OBS, B) float32; returns (ACT, B) float32.

    Preferred entry point: no wrapper-side transposes / extra HBM round trips.
    """
    w1, b1, w2, b2, w3, b3 = params
    B = xT.shape[1]

    if block_batch is None:
        block_batch = min(_default_batch_tile(), _round_up(max(B, 1), _LANE))
    assert block_batch % _LANE == 0, "batch tile must be a multiple of 128 lanes"

    num_tiles = pl.cdiv(B, block_batch)
    b_pad = num_tiles * block_batch
    if b_pad != B:
        # Zero-pad the tail tile; padded columns are computed then discarded.
        xT = jnp.pad(xT, ((0, 0), (0, b_pad - B)))

    def resident(shape):
        # Whole-array block, same block every grid step -> stays in VMEM (no re-DMA).
        return pl.BlockSpec(shape, lambda i: tuple(0 for _ in shape))

    def build(dim_semantics):
        return pl.pallas_call(
            mlp_kernel,
            out_shape=jax.ShapeDtypeStruct((ACT, b_pad), jnp.float32),
            grid=(num_tiles,),
            in_specs=[
                pl.BlockSpec((OBS, block_batch), lambda i: (0, i)),  # x tile, lane-dense
                resident(w1.shape), resident(b1.shape),
                resident(w2.shape), resident(b2.shape),
                resident(w3.shape), resident(b3.shape),
            ],
            out_specs=pl.BlockSpec((ACT, block_batch), lambda i: (0, i)),
            compiler_params=pltpu.CompilerParams(
                dimension_semantics=dim_semantics,
                vmem_limit_bytes=_vmem_limit_bytes(block_batch),
            ),
        )

    if "v7" in _device_kind() and num_tiles > 1:
        # v7x: shard the batch grid across both TensorCores.
        try:
            out_T = build((pltpu.CORE_PARALLEL,))(xT, w1, b1, w2, b2, w3, b3)
            return out_T[:, :B]
        except Exception:
            pass  # platform rejected core-parallel lowering; fall back below

    out_T = build(("parallel",))(xT, w1, b1, w2, b2, w3, b3)
    return out_T[:, :B]


def lunar_lander_mlp_forward(x, params, block_batch=None, force_kernel=False):
    """Batch-major API matching the PyTorch module: x (B, OBS) -> (B, ACT)."""
    B = x.shape[0]
    if not force_kernel and B < _SMALL_BATCH_THRESHOLD:
        # Kernel-launch + DMA latency dominates at tiny B; plain XLA is faster.
        return reference_forward(x, params)
    # NOTE: for peak end-to-end perf feed feature-major (OBS, B) data straight to
    # lunar_lander_mlp_forward_T; these transposes are extra XLA HBM round trips.
    return lunar_lander_mlp_forward_T(x.T, params, block_batch=block_batch).T


def init_params(key):
    """Deterministic init mimicking nn.Linear's U(-1/sqrt(fan_in), 1/sqrt(fan_in)).

    Weights are PyTorch-native (out_features, in_features); biases are (out, 1)
    so they broadcast along the lane (batch) axis inside the kernel.
    """
    ks = jax.random.split(key, 6)

    def linear(kw, kb, fan_in, fan_out):
        bound = 1.0 / math.sqrt(fan_in)
        w = jax.random.uniform(kw, (fan_out, fan_in), jnp.float32, -bound, bound)
        b = jax.random.uniform(kb, (fan_out, 1), jnp.float32, -bound, bound)
        return w, b

    w1, b1 = linear(ks[0], ks[1], OBS, H1)
    w2, b2 = linear(ks[2], ks[3], H1, H2)
    w3, b3 = linear(ks[4], ks[5], H2, ACT)
    return (w1, b1, w2, b2, w3, b3)


def reference_forward(x, params):
    w1, b1, w2, b2, w3, b3 = params
    h1 = jnp.maximum(x @ w1.T + b1.T, 0.0)
    h2 = jnp.maximum(h1 @ w2.T + b2.T, 0.0)
    return h2 @ w3.T + b3.T


if __name__ == "__main__":
    key = jax.random.PRNGKey(0)
    k_params, k_x1, k_x2, k_x3 = jax.random.split(key, 4)
    params = init_params(k_params)

    # 1) Small case matching the module's typical use; force the Pallas path so the
    #    kernel itself is exercised (default dispatch would pick plain XLA at B=2).
    B = 2
    x = jax.random.normal(k_x1, (B, OBS), dtype=jnp.float32)
    out = lunar_lander_mlp_forward(x, params, force_kernel=True)
    jax.block_until_ready(out)
    ref = reference_forward(x, params)
    assert out.shape == (B, ACT)
    assert jnp.allclose(out, ref, atol=1e-5, rtol=1e-5)

    # Small-batch dispatch path (no kernel launch) must agree too.
    out_d = lunar_lander_mlp_forward(x, params)
    jax.block_until_ready(out_d)
    assert jnp.allclose(out_d, ref, atol=1e-5, rtol=1e-5)

    # 2) Non-multiple-of-tile batch with an explicit small tile: exercises the batch
    #    grid (3 steps), resident weights, and tail padding.
    B2 = 300
    x2 = jax.random.normal(k_x2, (B2, OBS), dtype=jnp.float32)
    out2 = lunar_lander_mlp_forward(x2, params, block_batch=128, force_kernel=True)
    jax.block_until_ready(out2)
    ref2 = reference_forward(x2, params)
    assert out2.shape == (B2, ACT)
    assert jnp.allclose(out2, ref2, atol=1e-5, rtol=1e-5)

    # 3) Feature-major entry point (no wrapper transposes), default per-chip tile.
    B3 = 1536
    x3T = jax.random.normal(k_x3, (OBS, B3), dtype=jnp.float32)
    out3T = lunar_lander_mlp_forward_T(x3T, params)
    jax.block_until_ready(out3T)
    ref3 = reference_forward(x3T.T, params)
    assert out3T.shape == (ACT, B3)
    assert jnp.allclose(out3T.T, ref3, atol=1e-5, rtol=1e-5)

    print("KERNEL_OK")
</pallas_src>

<mosaic_0001>
module attributes {stable_mosaic.version = 11 : i64} {
  func.func @mlp_kernel(%arg0: i32, %arg1: memref<8x128xf32, #tpu.memory_space<vmem>>, %arg2: memref<64x8xf32, #tpu.memory_space<vmem>>, %arg3: memref<64x1xf32, #tpu.memory_space<vmem>>, %arg4: memref<32x64xf32, #tpu.memory_space<vmem>>, %arg5: memref<32x1xf32, #tpu.memory_space<vmem>>, %arg6: memref<4x32xf32, #tpu.memory_space<vmem>>, %arg7: memref<4x1xf32, #tpu.memory_space<vmem>>, %arg8: memref<4x128xf32, #tpu.memory_space<vmem>>) attributes {dimension_semantics = [#tpu.dimension_semantics<parallel>], iteration_bounds = array<i64: 1>, scalar_prefetch = 0 : i64, scratch_operands = 0 : i64, tpu.core_type = #tpu.core_type<tc>, window_params = [{transform_indices = @transform_0, window_bounds = array<i64: 8, 128>}, {pipeline_mode = #tpu.pipeline_mode<synchronous>, transform_indices = @transform_1, window_bounds = array<i64: 64, 8>}, {pipeline_mode = #tpu.pipeline_mode<synchronous>, transform_indices = @transform_2, window_bounds = array<i64: 64, 1>}, {pipeline_mode = #tpu.pipeline_mode<synchronous>, transform_indices = @transform_3, window_bounds = array<i64: 32, 64>}, {pipeline_mode = #tpu.pipeline_mode<synchronous>, transform_indices = @transform_4, window_bounds = array<i64: 32, 1>}, {pipeline_mode = #tpu.pipeline_mode<synchronous>, transform_indices = @transform_5, window_bounds = array<i64: 4, 32>}, {pipeline_mode = #tpu.pipeline_mode<synchronous>, transform_indices = @transform_6, window_bounds = array<i64: 4, 1>}, {transform_indices = @transform_7, window_bounds = array<i64: 4, 128>}]} {
    %c0 = arith.constant 0 : index
    %c0_0 = arith.constant 0 : index
    %0 = vector.load %arg1[%c0, %c0_0] : memref<8x128xf32, #tpu.memory_space<vmem>>, vector<8x128xf32>
    %c0_1 = arith.constant 0 : index
    %c0_2 = arith.constant 0 : index
    %1 = vector.load %arg2[%c0_1, %c0_2] : memref<64x8xf32, #tpu.memory_space<vmem>>, vector<64x8xf32>
    %cst = arith.constant dense<0.000000e+00> : vector<64x128xf32>
    %2 = tpu.matmul %1, %0, %cst {dimension_numbers = #tpu.dot_dimension_numbers<[1], [0], [0], [1], [0, 0, 1, 1], [], []>} : vector<64x8xf32>, vector<8x128xf32>, vector<64x128xf32> -> vector<64x128xf32>
    %c0_3 = arith.constant 0 : index
    %c0_4 = arith.constant 0 : index
    %3 = vector.load %arg3[%c0_3, %c0_4] : memref<64x1xf32, #tpu.memory_space<vmem>>, vector<64x1xf32>
    %4 = vector.broadcast %3 : vector<64x1xf32> to vector<64x128xf32>
    %5 = arith.addf %2, %4 : vector<64x128xf32>
    %cst_5 = arith.constant 0.000000e+00 : f32
    %6 = vector.broadcast %cst_5 : f32 to vector<64x128xf32>
    %7 = arith.maximumf %5, %6 : vector<64x128xf32>
    %c0_6 = arith.constant 0 : index
    %c0_7 = arith.constant 0 : index
    %8 = vector.load %arg4[%c0_6, %c0_7] : memref<32x64xf32, #tpu.memory_space<vmem>>, vector<32x64xf32>
    %cst_8 = arith.constant dense<0.000000e+00> : vector<32x128xf32>
    %9 = tpu.matmul %8, %7, %cst_8 {dimension_numbers = #tpu.dot_dimension_numbers<[1], [0], [0], [1], [0, 0, 1, 1], [], []>} : vector<32x64xf32>, vector<64x128xf32>, vector<32x128xf32> -> vector<32x128xf32>
    %c0_9 = arith.constant 0 : index
    %c0_10 = arith.constant 0 : index
    %10 = vector.load %arg5[%c0_9, %c0_10] : memref<32x1xf32, #tpu.memory_space<vmem>>, vector<32x1xf32>
    %11 = vector.broadcast %10 : vector<32x1xf32> to vector<32x128xf32>
    %12 = arith.addf %9, %11 : vector<32x128xf32>
    %cst_11 = arith.constant 0.000000e+00 : f32
    %13 = vector.broadcast %cst_11 : f32 to vector<32x128xf32>
    %14 = arith.maximumf %12, %13 : vector<32x128xf32>
    %c0_12 = arith.constant 0 : index
    %c0_13 = arith.constant 0 : index
    %15 = vector.load %arg6[%c0_12, %c0_13] : memref<4x32xf32, #tpu.memory_space<vmem>>, vector<4x32xf32>
    %cst_14 = arith.constant dense<0.000000e+00> : vector<4x128xf32>
    %16 = tpu.matmul %15, %14, %cst_14 {dimension_numbers = #tpu.dot_dimension_numbers<[1], [0], [0], [1], [0, 0, 1, 1], [], []>} : vector<4x32xf32>, vector<32x128xf32>, vector<4x128xf32> -> vector<4x128xf32>
    %c0_15 = arith.constant 0 : index
    %c0_16 = arith.constant 0 : index
    %17 = vector.load %arg7[%c0_15, %c0_16] : memref<4x1xf32, #tpu.memory_space<vmem>>, vector<4x1xf32>
    %18 = vector.broadcast %17 : vector<4x1xf32> to vector<4x128xf32>
    %19 = arith.addf %16, %18 : vector<4x128xf32>
    %c0_17 = arith.constant 0 : index
    %c0_18 = arith.constant 0 : index
    %20 = vector.load %arg8[%c0_17, %c0_18] : memref<4x128xf32, #tpu.memory_space<vmem>>, vector<4x128xf32>
    tpu.vector_store %arg8[%c0_17, %c0_18], %19 {strides = array<i32>} : memref<4x128xf32, #tpu.memory_space<vmem>>, vector<4x128xf32>,
    return
  }
  func.func @transform_0(%arg0: i32) -> (i32, i32) {
    %c0_i32 = arith.constant 0 : i32
    %c0_i32_0 = arith.constant 0 : i32
    return %c0_i32, %arg0 : i32, i32
  }
  func.func @transform_1(%arg0: i32) -> (i32, i32) {
    %c0_i32 = arith.constant 0 : i32
    %c0_i32_0 = arith.constant 0 : i32
    %c0_i32_1 = arith.constant 0 : i32
    return %c0_i32, %c0_i32_0 : i32, i32
  }
  func.func @transform_2(%arg0: i32) -> (i32, i32) {
    %c0_i32 = arith.constant 0 : i32
    %c0_i32_0 = arith.constant 0 : i32
    %c0_i32_1 = arith.constant 0 : i32
    return %c0_i32, %c0_i32_0 : i32, i32
  }
  func.func @transform_3(%arg0: i32) -> (i32, i32) {
    %c0_i32 = arith.constant 0 : i32
    %c0_i32_0 = arith.constant 0 : i32
    %c0_i32_1 = arith.constant 0 : i32
    return %c0_i32, %c0_i32_0 : i32, i32
  }
  func.func @transform_4(%arg0: i32) -> (i32, i32) {
    %c0_i32 = arith.constant 0 : i32
    %c0_i32_0 = arith.constant 0 : i32
    %c0_i32_1 = arith.constant 0 : i32
    return %c0_i32, %c0_i32_0 : i32, i32
  }
  func.func @transform_5(%arg0: i32) -> (i32, i32) {
    %c0_i32 = arith.constant 0 : i32
    %c0_i32_0 = arith.constant 0 : i32
    %c0_i32_1 = arith.constant 0 : i32
    return %c0_i32, %c0_i32_0 : i32, i32
  }
  func.func @transform_6(%arg0: i32) -> (i32, i32) {
    %c0_i32 = arith.constant 0 : i32
    %c0_i32_0 = arith.constant 0 : i32
    %c0_i32_1 = arith.constant 0 : i32
    return %c0_i32, %c0_i32_0 : i32, i32
  }
  func.func @transform_7(%arg0: i32) -> (i32, i32) {
    %c0_i32 = arith.constant 0 : i32
    %c0_i32_0 = arith.constant 0 : i32
    return %c0_i32, %arg0 : i32, i32
  }
}

</mosaic_0001>

<llo_original>
// kernel: tpu_custom_call.1
$region0: #{tpu_custom_call.1}
  #allocation0 [shape = 'u32[]', space=smem, size = 0x4, offset = 0x4, fixed_abs, tag = 'smem constant byte address 0x4 - core index']
  #allocation1 [shape = 'u32[144,128]{1,0:T(1,128)}', space=vmem, size = 0x12000, scoped, tag = 'internal scratch']
  %s0 = inlined_call_operand.vmem [shape: f32[8,128], index: 0, kind: input, shape index: {}]
  %s1 = inlined_call_operand.vmem [shape: f32[64,8], index: 1, kind: input, shape index: {}]
  %s2 = inlined_call_operand.vmem [shape: f32[64,1], index: 2, kind: input, shape index: {}]
  %s3 = inlined_call_operand.vmem [shape: f32[32,64], index: 3, kind: input, shape index: {}]
  %s4 = inlined_call_operand.vmem [shape: f32[32,1], index: 4, kind: input, shape index: {}]
  %s5 = inlined_call_operand.vmem [shape: f32[4,32], index: 5, kind: input, shape index: {}]
  %s6 = inlined_call_operand.vmem [shape: f32[4,1], index: 6, kind: input, shape index: {}]
  %s7 = inlined_call_operand.hbm [shape: f32[4,128], index: 7, kind: output, shape index: {}]
  %s8 = sld [smem:[#allocation0]]
  $region38: #{tpu_custom_call.1} parent=0
    _
  %s10 = ssub.s32 1, %s8
  %s11 = scalar_select 0, %s10, %s8
  $region1: #{tpu_custom_call.1} parent=0
    #allocation2 [shape = 'u8[2048]{0}', space=vmem, size = 0x800, scoped, tag = 'output window, operand 0, single buffered']
    #allocation3 [shape = 's32[1]{0}', space=sflag, size = 0x4, scoped, tag = 'scoped memory for tpu_custom_call.1']
    %12 = vsyncpa [#allocation3], 0
    // Predicated region
    $region2: #{tpu_custom_call.1} parent=1 // pred_check
      _
    $region3: #{tpu_custom_call.1} parent=1 // pred_check_branch
      %14 = sbr.rel (0) target = $region5
    $region4: #{tpu_custom_call.1} parent=1 // pred_region
      _
    $region5: #{tpu_custom_call.1} parent=1 // pred_fallthru
      _
    // Predicated region
    $region6: #{tpu_custom_call.1} parent=1 // pred_check
      _
    $region7: #{tpu_custom_call.1} parent=1 // pred_check_branch
      %16 = sbr.rel (0) target = $region9
    $region8: #{tpu_custom_call.1} parent=1 // pred_region
      _
    $region9: #{tpu_custom_call.1} parent=1 // pred_fallthru
      _
    // Predicated region
    $region10: #{tpu_custom_call.1} parent=1 // pred_check
      _
    $region11: #{tpu_custom_call.1} parent=1 // pred_check_branch
      %18 = sbr.rel (0) target = $region13
    $region12: #{tpu_custom_call.1} parent=1 // pred_region
      _
    $region13: #{tpu_custom_call.1} parent=1 // pred_fallthru
      _
    // Predicated region
    $region14: #{tpu_custom_call.1} parent=1 // pred_check
      _
    $region15: #{tpu_custom_call.1} parent=1 // pred_check_branch
      %20 = sbr.rel (0) target = $region17
    $region16: #{tpu_custom_call.1} parent=1 // pred_region
      _
    $region17: #{tpu_custom_call.1} parent=1 // pred_fallthru
      _
    // Predicated region
    $region18: #{tpu_custom_call.1} parent=1 // pred_check
      _
    $region19: #{tpu_custom_call.1} parent=1 // pred_check_branch
      %22 = sbr.rel (0) target = $region21
    $region20: #{tpu_custom_call.1} parent=1 // pred_region
      _
    $region21: #{tpu_custom_call.1} parent=1 // pred_fallthru
      _
    // Predicated region
    $region22: #{tpu_custom_call.1} parent=1 // pred_check
      _
    $region23: #{tpu_custom_call.1} parent=1 // pred_check_branch
      %24 = sbr.rel (0) target = $region25
    $region24: #{tpu_custom_call.1} parent=1 // pred_region
      _
    $region25: #{tpu_custom_call.1} parent=1 // pred_fallthru
      _
    // Predicated region
    $region26: #{tpu_custom_call.1} parent=1 // pred_check
      _
    $region27: #{tpu_custom_call.1} parent=1 // pred_check_branch
      %26 = sbr.rel (0) target = $region29
    $region28: #{tpu_custom_call.1} parent=1 // pred_region
      _
    $region29: #{tpu_custom_call.1} parent=1 // pred_fallthru
      _
    %v27 = vld [vmem:[%s0] sm:$0xff]
    %v28 = vld [vmem:[%s1] sm:$0xff]
    %v29 = vld [vmem:[%s1 + $0x8] sm:$0xff]
    %v30 = vld [vmem:[%s1 + $0x10] sm:$0xff]
    %v31 = vld [vmem:[%s1 + $0x18] sm:$0xff]
    %v32 = vld [vmem:[%s1 + $0x20] sm:$0xff]
    %v33 = vld [vmem:[%s1 + $0x28] sm:$0xff]
    %v34 = vld [vmem:[%s1 + $0x30] sm:$0xff]
    %v35 = vld [vmem:[%s1 + $0x38] sm:$0xff]
    %v36 = vld [vmem:[%s2] sm:$0xff]
    %v37 = vld [vmem:[%s2 + $0x8] sm:$0xff]
    %v38 = vld [vmem:[%s2 + $0x10] sm:$0xff]
    %v39 = vld [vmem:[%s2 + $0x18] sm:$0xff]
    %v40 = vld [vmem:[%s2 + $0x20] sm:$0xff]
    %v41 = vld [vmem:[%s2 + $0x28] sm:$0xff]
    %v42 = vld [vmem:[%s2 + $0x30] sm:$0xff]
    %v43 = vld [vmem:[%s2 + $0x38] sm:$0xff]
    %45 = vset.pattern.permute.xlu0 0
    %46 = vperm.xlu0 %45, %v36
    %v47 = vpop.permute.xlu0 %46
    %50 = vset.pattern.permute.xlu0 0
    %51 = vperm.xlu0 %50, %v37
    %v52 = vpop.permute.xlu0 %51
    %55 = vset.pattern.permute.xlu0 0
    %56 = vperm.xlu0 %55, %v38
    %v57 = vpop.permute.xlu0 %56
    %60 = vset.pattern.permute.xlu0 0
    %61 = vperm.xlu0 %60, %v39
    %v62 = vpop.permute.xlu0 %61
    %65 = vset.pattern.permute.xlu0 0
    %66 = vperm.xlu0 %65, %v40
    %v67 = vpop.permute.xlu0 %66
    %70 = vset.pattern.permute.xlu0 0
    %71 = vperm.xlu0 %70, %v41
    %v72 = vpop.permute.xlu0 %71
    %75 = vset.pattern.permute.xlu0 0
    %76 = vperm.xlu0 %75, %v42
    %v77 = vpop.permute.xlu0 %76
    %80 = vset.pattern.permute.xlu0 0
    %81 = vperm.xlu0 %80, %v43
    %v82 = vpop.permute.xlu0 %81
    %vm84 = vcmask 64512
    %v86 = vsel %vm84, %v28, 0
    %v89 = vsel %vm84, %v29, 0
    %v92 = vsel %vm84, %v30, 0
    %v95 = vsel %vm84, %v31, 0
    %v98 = vsel %vm84, %v32, 0
    %v101 = vsel %vm84, %v33, 0
    %v104 = vsel %vm84, %v34, 0
    %v107 = vsel %vm84, %v35, 0
    %109 = vmatprep.subr.mxu0 0.0
    %110 = vmatpush1.msra.mxu0 0.0
    %111 = vmatprep.subr.mxu0 0.0
    %112 = vmatpush1.msra.mxu0 0.0
    %113 = vmatprep.subr.mxu0 0.0
    %114 = vmatpush1.msra.mxu0 0.0
    %115 = vmatprep.subr.mxu0 0.0
    %116 = vmatpush1.msra.mxu0 0.0
    %117 = vmatprep.subr.mxu0 0.0
    %118 = vmatpush1.msra.mxu0 0.0
    %119 = vmatprep.subr.mxu0 0.0
    %120 = vmatpush1.msra.mxu0 0.0
    %121 = vmatprep.subr.mxu0 0.0
    %122 = vmatpush1.msra.mxu0 0.0
    %123 = vmatprep.subr.mxu0 0.0
    %124 = vmatpush1.msra.mxu0 0.0
    %125 = vmatprep.subr.mxu0 0.0
    %126 = vmatpush1.msra.mxu0 0.0
    %127 = vmatprep.subr.mxu0 0.0
    %128 = vmatpush1.msra.mxu0 0.0
    %129 = vmatprep.subr.mxu0 0.0
    %130 = vmatpush1.msra.mxu0 0.0
    %131 = vmatprep.subr.mxu0 0.0
    %132 = vmatpush1.msra.mxu0 0.0
    %133 = vmatprep.subr.mxu0 0.0
    %134 = vmatpush1.msra.mxu0 0.0
    %135 = vmatprep.subr.mxu0 0.0
    %136 = vmatpush1.msra.mxu0 0.0
    %137 = vmatprep.subr.mxu0 0.0
    %138 = vmatpush1.msra.mxu0 0.0
    %139 = vmatprep.subr.mxu0 0.0
    %140 = vmatpush1.msra.mxu0 %v27
    %141 = vmatprep.subr.mxu0 0.0
    %142 = vmatpush2.msra.mxu0 0.0
    %143 = vmatprep.subr.mxu0 0.0
    %144 = vmatpush2.msra.mxu0 0.0
    %145 = vmatprep.subr.mxu0 0.0
    %146 = vmatpush2.msra.mxu0 0.0
    %147 = vmatprep.subr.mxu0 0.0
    %148 = vmatpush2.msra.mxu0 0.0
    %149 = vmatprep.subr.mxu0 0.0
    %150 = vmatpush2.msra.mxu0 0.0
    %151 = vmatprep.subr.mxu0 0.0
    %152 = vmatpush2.msra.mxu0 0.0
    %153 = vmatprep.subr.mxu0 0.0
    %154 = vmatpush2.msra.mxu0 0.0
    %155 = vmatprep.subr.mxu0 0.0
    %156 = vmatpush2.msra.mxu0 0.0
    %157 = vmatprep.subr.mxu0 0.0
    %158 = vmatpush2.msra.mxu0 0.0
    %159 = vmatprep.subr.mxu0 0.0
    %160 = vmatpush2.msra.mxu0 0.0
    %161 = vmatprep.subr.mxu0 0.0
    %162 = vmatpush2.msra.mxu0 0.0
    %163 = vmatprep.subr.mxu0 0.0
    %164 = vmatpush2.msra.mxu0 0.0
    %165 = vmatprep.subr.mxu0 0.0
    %166 = vmatpush2.msra.mxu0 0.0
    %167 = vmatprep.subr.mxu0 0.0
    %168 = vmatpush2.msra.mxu0 0.0
    %169 = vmatprep.subr.mxu0 0.0
    %170 = vmatpush2.msra.mxu0 0.0
    %171 = vmatprep.subr.mxu0 0.0
    %172 = vmatpush2.msra.mxu0 0.0
    %173 = vmatprep.mubr.f32.mxu0 0.0
    %174 = vmatmul.mubr.f32.gmra.mxu0 %v86
    %v175 = vpop.f32.mrf.mxu0
    %v176 = vadd.f32 %v47, %v175
    %v177 = vpop.f32.mrf.mxu0
    %178 = vmatprep.mubr.f32.mxu0 0.0
    %179 = vmatmul.mubr.f32.gmra.mxu0 %v89
    %v180 = vpop.f32.mrf.mxu0
    %v181 = vadd.f32 %v52, %v180
    %v182 = vpop.f32.mrf.mxu0
    %183 = vmatprep.mubr.f32.mxu0 0.0
    %184 = vmatmul.mubr.f32.gmra.mxu0 %v92
    %v185 = vpop.f32.mrf.mxu0
    %v186 = vadd.f32 %v57, %v185
    %v187 = vpop.f32.mrf.mxu0
    %188 = vmatprep.mubr.f32.mxu0 0.0
    %189 = vmatmul.mubr.f32.gmra.mxu0 %v95
    %v190 = vpop.f32.mrf.mxu0
    %v191 = vadd.f32 %v62, %v190
    %v192 = vpop.f32.mrf.mxu0
    %193 = vmatprep.mubr.f32.mxu0 0.0
    %194 = vmatmul.mubr.f32.gmra.mxu0 %v98
    %v195 = vpop.f32.mrf.mxu0
    %v196 = vadd.f32 %v67, %v195
    %v197 = vpop.f32.mrf.mxu0
    %198 = vmatprep.mubr.f32.mxu0 0.0
    %199 = vmatmul.mubr.f32.gmra.mxu0 %v101
    %v200 = vpop.f32.mrf.mxu0
    %v201 = vadd.f32 %v72, %v200
    %v202 = vpop.f32.mrf.mxu0
    %203 = vmatprep.mubr.f32.mxu0 0.0
    %204 = vmatmul.mubr.f32.gmra.mxu0 %v104
    %v205 = vpop.f32.mrf.mxu0
    %v206 = vadd.f32 %v77, %v205
    %v207 = vpop.f32.mrf.mxu0
    %208 = vmatprep.mubr.f32.mxu0 0.0
    %209 = vmatmul.mubr.f32.gmra.mxu0 %v107
    %v210 = vpop.f32.mrf.mxu0
    %v211 = vadd.f32 %v82, %v210
    %v212 = vpop.f32.mrf.mxu0
    %213 = vdwg.mxu0
    %v214 = vmax.f32 %v176, 0.0
    %v215 = vmax.f32 %v181, 0.0
    %v216 = vmax.f32 %v186, 0.0
    %v217 = vmax.f32 %v191, 0.0
    %v218 = vmax.f32 %v196, 0.0
    %v219 = vmax.f32 %v201, 0.0
    %v220 = vmax.f32 %v206, 0.0
    %v221 = vmax.f32 %v211, 0.0
    %v222 = vld [vmem:[%s3] sm:$0xff]
    %v223 = vld [vmem:[%s3 + $0x8] sm:$0xff]
    %v224 = vld [vmem:[%s3 + $0x10] sm:$0xff]
    %v225 = vld [vmem:[%s3 + $0x18] sm:$0xff]
    %v226 = vld [vmem:[%s4] sm:$0xff]
    %v227 = vld [vmem:[%s4 + $0x8] sm:$0xff]
    %v228 = vld [vmem:[%s4 + $0x10] sm:$0xff]
    %v229 = vld [vmem:[%s4 + $0x18] sm:$0xff]
    %231 = vset.pattern.permute.xlu0 0
    %232 = vperm.xlu0 %231, %v226
    %v233 = vpop.permute.xlu0 %232
    %236 = vset.pattern.permute.xlu0 0
    %237 = vperm.xlu0 %236, %v227
    %v238 = vpop.permute.xlu0 %237
    %241 = vset.pattern.permute.xlu0 0
    %242 = vperm.xlu0 %241, %v228
    %v243 = vpop.permute.xlu0 %242
    %246 = vset.pattern.permute.xlu0 0
    %247 = vperm.xlu0 %246, %v229
    %v248 = vpop.permute.xlu0 %247
    %vm250 = vcmask 523264
    %v252 = vsel %vm250, %v222, 0
    %v255 = vsel %vm250, %v223, 0
    %v258 = vsel %vm250, %v224, 0
    %v261 = vsel %vm250, %v225, 0
    %263 = vmatprep.subr.mxu0 0.0
    %264 = vmatpush1.msra.mxu0 0.0
    %265 = vmatprep.subr.mxu0 0.0
    %266 = vmatpush1.msra.mxu0 0.0
    %267 = vmatprep.subr.mxu0 0.0
    %268 = vmatpush1.msra.mxu0 0.0
    %269 = vmatprep.subr.mxu0 0.0
    %270 = vmatpush1.msra.mxu0 0.0
    %271 = vmatprep.subr.mxu0 0.0
    %272 = vmatpush1.msra.mxu0 0.0
    %273 = vmatprep.subr.mxu0 0.0
    %274 = vmatpush1.msra.mxu0 0.0
    %275 = vmatprep.subr.mxu0 0.0
    %276 = vmatpush1.msra.mxu0 0.0
    %277 = vmatprep.subr.mxu0 0.0
    %278 = vmatpush1.msra.mxu0 0.0
    %279 = vmatprep.subr.mxu0 0.0
    %280 = vmatpush1.msra.mxu0 %v221
    %281 = vmatprep.subr.mxu0 0.0
    %282 = vmatpush1.msra.mxu0 %v220
    %283 = vmatprep.subr.mxu0 0.0
    %284 = vmatpush1.msra.mxu0 %v219
    %285 = vmatprep.subr.mxu0 0.0
    %286 = vmatpush1.msra.mxu0 %v218
    %287 = vmatprep.subr.mxu0 0.0
    %288 = vmatpush1.msra.mxu0 %v217
    %289 = vmatprep.subr.mxu0 0.0
    %290 = vmatpush1.msra.mxu0 %v216
    %291 = vmatprep.subr.mxu0 0.0
    %292 = vmatpush1.msra.mxu0 %v215
    %293 = vmatprep.subr.mxu0 0.0
    %294 = vmatpush1.msra.mxu0 %v214
    %295 = vmatprep.subr.mxu0 0.0
    %296 = vmatpush2.msra.mxu0 0.0
    %297 = vmatprep.subr.mxu0 0.0
    %298 = vmatpush2.msra.mxu0 0.0
    %299 = vmatprep.subr.mxu0 0.0
    %300 = vmatpush2.msra.mxu0 0.0
    %301 = vmatprep.subr.mxu0 0.0
    %302 = vmatpush2.msra.mxu0 0.0
    %303 = vmatprep.subr.mxu0 0.0
    %304 = vmatpush2.msra.mxu0 0.0
    %305 = vmatprep.subr.mxu0 0.0
    %306 = vmatpush2.msra.mxu0 0.0
    %307 = vmatprep.subr.mxu0 0.0
    %308 = vmatpush2.msra.mxu0 0.0
    %309 = vmatprep.subr.mxu0 0.0
    %310 = vmatpush2.msra.mxu0 0.0
    %311 = vmatprep.subr.mxu0 0.0
    %312 = vmatpush2.msra.mxu0 0.0
    %313 = vmatprep.subr.mxu0 0.0
    %314 = vmatpush2.msra.mxu0 0.0
    %315 = vmatprep.subr.mxu0 0.0
    %316 = vmatpush2.msra.mxu0 0.0
    %317 = vmatprep.subr.mxu0 0.0
    %318 = vmatpush2.msra.mxu0 0.0
    %319 = vmatprep.subr.mxu0 0.0
    %320 = vmatpush2.msra.mxu0 0.0
    %321 = vmatprep.subr.mxu0 0.0
    %322 = vmatpush2.msra.mxu0 0.0
    %323 = vmatprep.subr.mxu0 0.0
    %324 = vmatpush2.msra.mxu0 0.0
    %325 = vmatprep.subr.mxu0 0.0
    %326 = vmatpush2.msra.mxu0 0.0
    %327 = vmatprep.mubr.f32.mxu0 0.0
    %328 = vmatmul.mubr.f32.gmra.mxu0 %v252
    %v329 = vpop.f32.mrf.mxu0
    %v330 = vadd.f32 %v233, %v329
    %v331 = vpop.f32.mrf.mxu0
    %332 = vmatprep.mubr.f32.mxu0 0.0
    %333 = vmatmul.mubr.f32.gmra.mxu0 %v255
    %v334 = vpop.f32.mrf.mxu0
    %v335 = vadd.f32 %v238, %v334
    %v336 = vpop.f32.mrf.mxu0
    %337 = vmatprep.mubr.f32.mxu0 0.0
    %338 = vmatmul.mubr.f32.gmra.mxu0 %v258
    %v339 = vpop.f32.mrf.mxu0
    %v340 = vadd.f32 %v243, %v339
    %v341 = vpop.f32.mrf.mxu0
    %342 = vmatprep.mubr.f32.mxu0 0.0
    %343 = vmatmul.mubr.f32.gmra.mxu0 %v261
    %v344 = vpop.f32.mrf.mxu0
    %v345 = vadd.f32 %v248, %v344
    %v346 = vpop.f32.mrf.mxu0
    %347 = vdwg.mxu0
    %v348 = vmax.f32 %v330, 0.0
    %v349 = vmax.f32 %v335, 0.0
    %v350 = vmax.f32 %v340, 0.0
    %v351 = vmax.f32 %v345, 0.0
    %v352 = vld [vmem:[%s5] sm:$0xf]
    %v353 = vld [vmem:[%s6] sm:$0xf]
    %355 = vset.pattern.permute.xlu0 0
    %356 = vperm.xlu0 %355, %v353
    %v357 = vpop.permute.xlu0 %356
    %vm359 = vcmask 261120
    %v361 = vsel %vm359, %v352, 0
    %363 = vmatprep.subr.mxu0 0.0
    %364 = vmatpush1.msra.mxu0 0.0
    %365 = vmatprep.subr.mxu0 0.0
    %366 = vmatpush1.msra.mxu0 0.0
    %367 = vmatprep.subr.mxu0 0.0
    %368 = vmatpush1.msra.mxu0 0.0
    %369 = vmatprep.subr.mxu0 0.0
    %370 = vmatpush1.msra.mxu0 0.0
    %371 = vmatprep.subr.mxu0 0.0
    %372 = vmatpush1.msra.mxu0 0.0
    %373 = vmatprep.subr.mxu0 0.0
    %374 = vmatpush1.msra.mxu0 0.0
    %375 = vmatprep.subr.mxu0 0.0
    %376 = vmatpush1.msra.mxu0 0.0
    %377 = vmatprep.subr.mxu0 0.0
    %378 = vmatpush1.msra.mxu0 0.0
    %379 = vmatprep.subr.mxu0 0.0
    %380 = vmatpush1.msra.mxu0 0.0
    %381 = vmatprep.subr.mxu0 0.0
    %382 = vmatpush1.msra.mxu0 0.0
    %383 = vmatprep.subr.mxu0 0.0
    %384 = vmatpush1.msra.mxu0 0.0
    %385 = vmatprep.subr.mxu0 0.0
    %386 = vmatpush1.msra.mxu0 0.0
    %387 = vmatprep.subr.mxu0 0.0
    %388 = vmatpush1.msra.mxu0 %v351
    %389 = vmatprep.subr.mxu0 0.0
    %390 = vmatpush1.msra.mxu0 %v350
    %391 = vmatprep.subr.mxu0 0.0
    %392 = vmatpush1.msra.mxu0 %v349
    %393 = vmatprep.subr.mxu0 0.0
    %394 = vmatpush1.msra.mxu0 %v348
    %395 = vmatprep.subr.mxu0 0.0
    %396 = vmatpush2.msra.mxu0 0.0
    %397 = vmatprep.subr.mxu0 0.0
    %398 = vmatpush2.msra.mxu0 0.0
    %399 = vmatprep.subr.mxu0 0.0
    %400 = vmatpush2.msra.mxu0 0.0
    %401 = vmatprep.subr.mxu0 0.0
    %402 = vmatpush2.msra.mxu0 0.0
    %403 = vmatprep.subr.mxu0 0.0
    %404 = vmatpush2.msra.mxu0 0.0
    %405 = vmatprep.subr.mxu0 0.0
    %406 = vmatpush2.msra.mxu0 0.0
    %407 = vmatprep.subr.mxu0 0.0
    %408 = vmatpush2.msra.mxu0 0.0
    %409 = vmatprep.subr.mxu0 0.0
    %410 = vmatpush2.msra.mxu0 0.0
    %411 = vmatprep.subr.mxu0 0.0
    %412 = vmatpush2.msra.mxu0 0.0
    %413 = vmatprep.subr.mxu0 0.0
    %414 = vmatpush2.msra.mxu0 0.0
    %415 = vmatprep.subr.mxu0 0.0
    %416 = vmatpush2.msra.mxu0 0.0
    %417 = vmatprep.subr.mxu0 0.0
    %418 = vmatpush2.msra.mxu0 0.0
    %419 = vmatprep.subr.mxu0 0.0
    %420 = vmatpush2.msra.mxu0 0.0
    %421 = vmatprep.subr.mxu0 0.0
    %422 = vmatpush2.msra.mxu0 0.0
    %423 = vmatprep.subr.mxu0 0.0
    %424 = vmatpush2.msra.mxu0 0.0
    %425 = vmatprep.subr.mxu0 0.0
    %426 = vmatpush2.msra.mxu0 0.0
    %427 = vmatprep.mubr.f32.mxu0 0.0
    %428 = vmatmul.mubr.f32.gmra.mxu0 %v361
    %v429 = vpop.f32.mrf.mxu0
    %v430 = vadd.f32 %v357, %v429
    %v431 = vpop.f32.mrf.mxu0
    %432 = vdwg.mxu0
    %433 = vst [vmem:[#allocation2] sm:$0xf] %v430
    // Predicated region
    $region30: #{tpu_custom_call.1} parent=1 // pred_check
      _
    $region31: #{tpu_custom_call.1} parent=1 // pred_check_branch
      %435 = sbr.rel (0) target = $region33
    $region32: #{tpu_custom_call.1} parent=1 // pred_region
      %s437 = ssub.s32 64, 64
      %438 = vsyncadd [#allocation3], %s437
      %s440 = sshll.u32 [#allocation2], 4
      %s441 = int_to_ptr.vmem [resolvable:$true] %s440
      %443 = dma.vmem_to_hbm [thread:$0]  %s441, 64, %s7, [#allocation3]
    $region33: #{tpu_custom_call.1} parent=1 // pred_fallthru
      _
    // Predicated region
    $region34: #{tpu_custom_call.1} parent=1 // pred_check
      _
    $region35: #{tpu_custom_call.1} parent=1 // pred_check_branch
      %445 = sbr.rel (0) target = $region37
    $region36: #{tpu_custom_call.1} parent=1 // pred_region
      %446 = dma.done [#allocation3], 64
    $region37: #{tpu_custom_call.1} parent=1 // pred_fallthru
      _
    %447 = vsyncpa [#allocation3], 1

</llo_original>
